<compile_context>
chip_gen: v5e
topology: v5e:2x2
jax: 0.10.0
libtpu: 0.0.40
codegen_flags: <defaults>
</compile_context>

<pallas_src>
import functools

import jax
import jax.numpy as jnp
from jax import lax
from jax.experimental import pallas as pl
from jax.experimental.pallas import tpu as pltpu

LANE = 128
SUB = 8


def _round_up(x: int, m: int) -> int:
    return ((x + m - 1) // m) * m


def _pad2d(a, rows: int, cols: int, dtype):
    """Cast to dtype and zero-pad a 2-D array up to (rows, cols) (no-op if already there)."""
    a = jnp.asarray(a, dtype)
    pr, pc = rows - a.shape[0], cols - a.shape[1]
    if pr == 0 and pc == 0:
        return a
    return jnp.pad(a, ((0, pr), (0, pc)))


def _projection_head_kernel(x_ref, w1_ref, b1_ref, w2_ref, b2_ref,
                            gamma_ref, beta_ref, o_ref, *, d_real: int):
    # x tile (TB, D_in_pad) bf16; w1/w2 bf16; biases / affine params f32.
    x = x_ref[...]
    w1 = w1_ref[...]
    w2 = w2_ref[...]
    b1 = b1_ref[...]
    b2 = b2_ref[...]
    gamma = gamma_ref[...]
    beta = beta_ref[...]

    # projected = Linear(input_dim -> projection_dim): bf16 MXU pass, f32 accumulate.
    projected = jnp.dot(x, w1, preferred_element_type=jnp.float32) + b1

    # Exact (erf-based) GELU in f32, matching torch.nn.GELU() default.
    inv_sqrt2 = jnp.float32(0.7071067811865476)
    h = 0.5 * projected * (1.0 + lax.erf(projected * inv_sqrt2))

    # fc = Linear(projection_dim -> projection_dim): bf16 MXU pass, f32 accumulate.
    y = jnp.dot(h.astype(jnp.bfloat16), w2, preferred_element_type=jnp.float32) + b2

    # Dropout(p=0.1) is identity in eval / inference mode.
    # TODO(synk): training-mode dropout (pltpu.prng_seed / prng_random_bits + 1/(1-p) scale).

    # residual
    r = y + projected

    # LayerNorm over the real feature width. Padded columns of r are exactly zero
    # (zero-padded weights / biases), so sums over the padded width equal sums over the
    # real width; divide by d_real and use E[r^2] - mean^2 so padding never biases stats.
    inv_d = jnp.float32(1.0 / d_real)
    mean = jnp.sum(r, axis=-1, keepdims=True) * inv_d
    ex2 = jnp.sum(r * r, axis=-1, keepdims=True) * inv_d
    var = ex2 - mean * mean
    normed = (r - mean) * lax.rsqrt(var + jnp.float32(1e-5))
    o_ref[...] = (normed * gamma + beta).astype(o_ref.dtype)


def _pick_batch_tile(b_rounded: int, d_in_pad: int, p_pad: int, block_rows: int,
                     vmem_budget_bytes: int = 28 * 1024 * 1024) -> int:
    """Batch tile: multiple of 8, <= block_rows, and small enough that the double-buffered
    x (bf16) and out (f32) tiles plus resident weights fit well inside scoped VMEM."""
    tb = min(_round_up(max(block_rows, SUB), SUB), b_rounded)
    # Conservatively count everything double-buffered.
    weights_bytes = 2 * (d_in_pad * p_pad * 2 + p_pad * p_pad * 2 + 4 * SUB * p_pad * 4)
    per_row_bytes = 2 * (d_in_pad * 2 + p_pad * 4)
    avail = max(vmem_budget_bytes - weights_bytes, 1 << 20)
    max_tb = max((avail // per_row_bytes) // SUB * SUB, SUB)
    return min(tb, max_tb)


def projection_head(x, w1, b1, w2, b2, gamma, beta, *, block_rows: int = 512):
    """x: (B, input_dim). w1: (input_dim, P), w2: (P, P). b1/b2/gamma/beta broadcastable to (1, P).

    Returns (B, P) float32. Internally pads feature dims to multiples of 128 (lane-dense)
    and the batch to a multiple of the batch tile; stores x / w1 / w2 as bf16.
    """
    B, d_in = x.shape
    d_in_w, P = w1.shape
    assert d_in == d_in_w, "w1 must be (input_dim, projection_dim)"
    assert w2.shape == (P, P)

    d_in_pad = _round_up(d_in, LANE)
    p_pad = _round_up(P, LANE)

    tb = _pick_batch_tile(_round_up(B, SUB), d_in_pad, p_pad, block_rows)
    b_pad = _round_up(B, tb)
    grid = (b_pad // tb,)

    # Zero-pad (single jnp.pad each; skipped when already aligned). Padded rows/cols
    # contribute nothing to the real outputs.
    xp = _pad2d(x, b_pad, d_in_pad, jnp.bfloat16)
    w1p = _pad2d(w1, d_in_pad, p_pad, jnp.bfloat16)
    w2p = _pad2d(w2, p_pad, p_pad, jnp.bfloat16)
    b1p = _pad2d(jnp.reshape(b1, (1, P)), 1, p_pad, jnp.float32)
    b2p = _pad2d(jnp.reshape(b2, (1, P)), 1, p_pad, jnp.float32)
    gp = _pad2d(jnp.reshape(gamma, (1, P)), 1, p_pad, jnp.float32)
    bp = _pad2d(jnp.reshape(beta, (1, P)), 1, p_pad, jnp.float32)

    kernel = functools.partial(_projection_head_kernel, d_real=P)

    flops = 2 * b_pad * (d_in_pad * p_pad + p_pad * p_pad)
    bytes_accessed = (xp.size * 2 + w1p.size * 2 + w2p.size * 2
                      + (b1p.size + b2p.size + gp.size + bp.size) * 4
                      + b_pad * p_pad * 4)

    # VMEM limit: leave headroom over the estimated need, never above the 64 MiB v7x cap.
    est_vmem = (2 * (tb * d_in_pad * 2 + tb * p_pad * 4)
                + 2 * (d_in_pad * p_pad * 2 + p_pad * p_pad * 2 + 4 * SUB * p_pad * 4))
    vmem_limit = min(64 * 1024 * 1024, max(32 * 1024 * 1024, (est_vmem * 5) // 4))

    out = pl.pallas_call(
        kernel,
        out_shape=jax.ShapeDtypeStruct((b_pad, p_pad), jnp.float32),
        grid=grid,
        in_specs=[
            pl.BlockSpec((tb, d_in_pad), lambda i: (i, 0)),        # x: tiled over batch
            pl.BlockSpec((d_in_pad, p_pad), lambda i: (0, 0)),      # w1: VMEM-resident
            pl.BlockSpec((1, p_pad), lambda i: (0, 0)),             # b1
            pl.BlockSpec((p_pad, p_pad), lambda i: (0, 0)),         # w2: VMEM-resident
            pl.BlockSpec((1, p_pad), lambda i: (0, 0)),             # b2
            pl.BlockSpec((1, p_pad), lambda i: (0, 0)),             # gamma
            pl.BlockSpec((1, p_pad), lambda i: (0, 0)),             # beta
        ],
        out_specs=pl.BlockSpec((tb, p_pad), lambda i: (i, 0)),
        compiler_params=pltpu.CompilerParams(
            dimension_semantics=("parallel",),                      # shard batch grid across TCs
            vmem_limit_bytes=int(vmem_limit),
        ),
        cost_estimate=pl.CostEstimate(flops=flops,
                                      transcendentals=b_pad * p_pad,
                                      bytes_accessed=bytes_accessed),
    )(xp, w1p, b1p, w2p, b2p, gp, bp)

    if b_pad == B and p_pad == P:
        return out
    return out[:B, :P]


def reference(x, w1, b1, w2, b2, gamma, beta):
    projected = x @ w1 + b1
    h = jax.nn.gelu(projected, approximate=False)
    y = h @ w2 + b2
    r = y + projected
    mean = jnp.mean(r, axis=-1, keepdims=True)
    var = jnp.mean((r - mean) ** 2, axis=-1, keepdims=True)
    return (r - mean) / jnp.sqrt(var + 1e-5) * gamma + beta


if __name__ == "__main__":
    batch = 24
    input_dim = 32
    projection_dim = 32

    key = jax.random.PRNGKey(0)
    kx, kw1, kb1, kw2, kb2 = jax.random.split(key, 5)

    x = jax.random.normal(kx, (batch, input_dim), dtype=jnp.float32)

    # PyTorch-Linear-style uniform init bounds (deterministic).
    bound1 = 1.0 / jnp.sqrt(input_dim)
    w1 = jax.random.uniform(kw1, (input_dim, projection_dim), jnp.float32, -bound1, bound1)
    b1 = jax.random.uniform(kb1, (1, projection_dim), jnp.float32, -bound1, bound1)

    bound2 = 1.0 / jnp.sqrt(projection_dim)
    w2 = jax.random.uniform(kw2, (projection_dim, projection_dim), jnp.float32, -bound2, bound2)
    b2 = jax.random.uniform(kb2, (1, projection_dim), jnp.float32, -bound2, bound2)

    # LayerNorm affine params (PyTorch init: ones / zeros).
    gamma = jnp.ones((1, projection_dim), jnp.float32)
    beta = jnp.zeros((1, projection_dim), jnp.float32)

    # Small block_rows just to exercise a multi-step batch grid (24 rows -> 3 steps).
    out = projection_head(x, w1, b1, w2, b2, gamma, beta, block_rows=8)
    out = jax.block_until_ready(out)

    # Reference computed on the same bf16-rounded x/w1/w2 (kernel stores them in bf16),
    # so the only remaining difference is mixed- vs full-precision accumulation.
    xb = x.astype(jnp.bfloat16).astype(jnp.float32)
    w1b = w1.astype(jnp.bfloat16).astype(jnp.float32)
    w2b = w2.astype(jnp.bfloat16).astype(jnp.float32)
    ref = reference(xb, w1b, b1, w2b, b2, gamma, beta)

    assert out.shape == (batch, projection_dim)
    assert bool(jnp.all(jnp.isfinite(out)))
    assert jnp.allclose(out, ref, atol=1e-2, rtol=1e-2), "mismatch vs reference"

    print("KERNEL_OK")
</pallas_src>

<mosaic_0001>
module attributes {stable_mosaic.version = 11 : i64} {
  func.func @_projection_head_kernel(%arg0: i32, %arg1: memref<8x128xbf16, #tpu.memory_space<vmem>>, %arg2: memref<128x128xbf16, #tpu.memory_space<vmem>>, %arg3: memref<1x128xf32, #tpu.memory_space<vmem>>, %arg4: memref<128x128xbf16, #tpu.memory_space<vmem>>, %arg5: memref<1x128xf32, #tpu.memory_space<vmem>>, %arg6: memref<1x128xf32, #tpu.memory_space<vmem>>, %arg7: memref<1x128xf32, #tpu.memory_space<vmem>>, %arg8: memref<8x128xf32, #tpu.memory_space<vmem>>) attributes {dimension_semantics = [#tpu.dimension_semantics<parallel>], iteration_bounds = array<i64: 3>, scalar_prefetch = 0 : i64, scratch_operands = 0 : i64, tpu.core_type = #tpu.core_type<tc>, window_params = [{transform_indices = @transform_0, window_bounds = array<i64: 8, 128>}, {pipeline_mode = #tpu.pipeline_mode<synchronous>, transform_indices = @transform_1, window_bounds = array<i64: 128, 128>}, {pipeline_mode = #tpu.pipeline_mode<synchronous>, transform_indices = @transform_2, window_bounds = array<i64: 1, 128>}, {pipeline_mode = #tpu.pipeline_mode<synchronous>, transform_indices = @transform_3, window_bounds = array<i64: 128, 128>}, {pipeline_mode = #tpu.pipeline_mode<synchronous>, transform_indices = @transform_4, window_bounds = array<i64: 1, 128>}, {pipeline_mode = #tpu.pipeline_mode<synchronous>, transform_indices = @transform_5, window_bounds = array<i64: 1, 128>}, {pipeline_mode = #tpu.pipeline_mode<synchronous>, transform_indices = @transform_6, window_bounds = array<i64: 1, 128>}, {transform_indices = @transform_7, window_bounds = array<i64: 8, 128>}]} {
    %c0 = arith.constant 0 : index
    %c0_0 = arith.constant 0 : index
    %0 = vector.load %arg1[%c0, %c0_0] : memref<8x128xbf16, #tpu.memory_space<vmem>>, vector<8x128xbf16>
    %c0_1 = arith.constant 0 : index
    %c0_2 = arith.constant 0 : index
    %1 = vector.load %arg2[%c0_1, %c0_2] : memref<128x128xbf16, #tpu.memory_space<vmem>>, vector<128x128xbf16>
    %c0_3 = arith.constant 0 : index
    %c0_4 = arith.constant 0 : index
    %2 = vector.load %arg4[%c0_3, %c0_4] : memref<128x128xbf16, #tpu.memory_space<vmem>>, vector<128x128xbf16>
    %c0_5 = arith.constant 0 : index
    %c0_6 = arith.constant 0 : index
    %3 = vector.load %arg3[%c0_5, %c0_6] : memref<1x128xf32, #tpu.memory_space<vmem>>, vector<1x128xf32>
    %c0_7 = arith.constant 0 : index
    %c0_8 = arith.constant 0 : index
    %4 = vector.load %arg5[%c0_7, %c0_8] : memref<1x128xf32, #tpu.memory_space<vmem>>, vector<1x128xf32>
    %c0_9 = arith.constant 0 : index
    %c0_10 = arith.constant 0 : index
    %5 = vector.load %arg6[%c0_9, %c0_10] : memref<1x128xf32, #tpu.memory_space<vmem>>, vector<1x128xf32>
    %c0_11 = arith.constant 0 : index
    %c0_12 = arith.constant 0 : index
    %6 = vector.load %arg7[%c0_11, %c0_12] : memref<1x128xf32, #tpu.memory_space<vmem>>, vector<1x128xf32>
    %cst = arith.constant dense<0.000000e+00> : vector<8x128xf32>
    %7 = tpu.matmul %0, %1, %cst {dimension_numbers = #tpu.dot_dimension_numbers<[1], [0], [0], [1], [0, 0, 1, 1], [], []>} : vector<8x128xbf16>, vector<128x128xbf16>, vector<8x128xf32> -> vector<8x128xf32>
    %8 = vector.broadcast %3 : vector<1x128xf32> to vector<8x128xf32>
    %9 = arith.addf %7, %8 : vector<8x128xf32>
    %cst_13 = arith.constant 5.000000e-01 : f32
    %10 = vector.broadcast %cst_13 : f32 to vector<8x128xf32>
    %11 = arith.mulf %10, %9 : vector<8x128xf32>
    %cst_14 = arith.constant 0.707106769 : f32
    %12 = vector.broadcast %cst_14 : f32 to vector<8x128xf32>
    %13 = arith.mulf %9, %12 : vector<8x128xf32>
    %14 = math.erf %13 : vector<8x128xf32>
    %cst_15 = arith.constant 1.000000e+00 : f32
    %15 = vector.broadcast %cst_15 : f32 to vector<8x128xf32>
    %16 = arith.addf %15, %14 : vector<8x128xf32>
    %17 = arith.mulf %11, %16 : vector<8x128xf32>
    %18 = arith.truncf %17 : vector<8x128xf32> to vector<8x128xbf16>
    %cst_16 = arith.constant dense<0.000000e+00> : vector<8x128xf32>
    %19 = tpu.matmul %18, %2, %cst_16 {dimension_numbers = #tpu.dot_dimension_numbers<[1], [0], [0], [1], [0, 0, 1, 1], [], []>} : vector<8x128xbf16>, vector<128x128xbf16>, vector<8x128xf32> -> vector<8x128xf32>
    %20 = vector.broadcast %4 : vector<1x128xf32> to vector<8x128xf32>
    %21 = arith.addf %19, %20 : vector<8x128xf32>
    %22 = arith.addf %21, %9 : vector<8x128xf32>
    %cst_17 = arith.constant dense<0.000000e+00> : vector<8xf32>
    %23 = vector.multi_reduction <add>, %22, %cst_17 [1] : vector<8x128xf32> to vector<8xf32>
    %24 = vector.shape_cast %23 : vector<8xf32> to vector<8x1xf32>
    %cst_18 = arith.constant 3.125000e-02 : f32
    %25 = vector.broadcast %cst_18 : f32 to vector<8x1xf32>
    %26 = arith.mulf %24, %25 : vector<8x1xf32>
    %27 = arith.mulf %22, %22 : vector<8x128xf32>
    %cst_19 = arith.constant dense<0.000000e+00> : vector<8xf32>
    %28 = vector.multi_reduction <add>, %27, %cst_19 [1] : vector<8x128xf32> to vector<8xf32>
    %29 = vector.shape_cast %28 : vector<8xf32> to vector<8x1xf32>
    %cst_20 = arith.constant 3.125000e-02 : f32
    %30 = vector.broadcast %cst_20 : f32 to vector<8x1xf32>
    %31 = arith.mulf %29, %30 : vector<8x1xf32>
    %32 = arith.mulf %26, %26 : vector<8x1xf32>
    %33 = arith.subf %31, %32 : vector<8x1xf32>
    %34 = vector.broadcast %26 : vector<8x1xf32> to vector<8x128xf32>
    %35 = arith.subf %22, %34 : vector<8x128xf32>
    %cst_21 = arith.constant 9.99999974E-6 : f32
    %36 = vector.broadcast %cst_21 : f32 to vector<8x1xf32>
    %37 = arith.addf %33, %36 : vector<8x1xf32>
    %38 = math.rsqrt %37 : vector<8x1xf32>
    %39 = vector.broadcast %38 : vector<8x1xf32> to vector<8x128xf32>
    %40 = arith.mulf %35, %39 : vector<8x128xf32>
    %41 = vector.broadcast %5 : vector<1x128xf32> to vector<8x128xf32>
    %42 = arith.mulf %40, %41 : vector<8x128xf32>
    %43 = vector.broadcast %6 : vector<1x128xf32> to vector<8x128xf32>
    %44 = arith.addf %42, %43 : vector<8x128xf32>
    %c0_22 = arith.constant 0 : index
    %c0_23 = arith.constant 0 : index
    %45 = vector.load %arg8[%c0_22, %c0_23] : memref<8x128xf32, #tpu.memory_space<vmem>>, vector<8x128xf32>
    tpu.vector_store %arg8[%c0_22, %c0_23], %44 {strides = array<i32>} : memref<8x128xf32, #tpu.memory_space<vmem>>, vector<8x128xf32>,
    return
  }
  func.func @transform_0(%arg0: i32) -> (i32, i32) {
    %c0_i32 = arith.constant 0 : i32
    %c0_i32_0 = arith.constant 0 : i32
    return %arg0, %c0_i32 : i32, i32
  }
  func.func @transform_1(%arg0: i32) -> (i32, i32) {
    %c0_i32 = arith.constant 0 : i32
    %c0_i32_0 = arith.constant 0 : i32
    %c0_i32_1 = arith.constant 0 : i32
    return %c0_i32, %c0_i32_0 : i32, i32
  }
  func.func @transform_2(%arg0: i32) -> (i32, i32) {
    %c0_i32 = arith.constant 0 : i32
    %c0_i32_0 = arith.constant 0 : i32
    %c0_i32_1 = arith.constant 0 : i32
    return %c0_i32, %c0_i32_0 : i32, i32
  }
  func.func @transform_3(%arg0: i32) -> (i32, i32) {
    %c0_i32 = arith.constant 0 : i32
    %c0_i32_0 = arith.constant 0 : i32
    %c0_i32_1 = arith.constant 0 : i32
    return %c0_i32, %c0_i32_0 : i32, i32
  }
  func.func @transform_4(%arg0: i32) -> (i32, i32) {
    %c0_i32 = arith.constant 0 : i32
    %c0_i32_0 = arith.constant 0 : i32
    %c0_i32_1 = arith.constant 0 : i32
    return %c0_i32, %c0_i32_0 : i32, i32
  }
  func.func @transform_5(%arg0: i32) -> (i32, i32) {
    %c0_i32 = arith.constant 0 : i32
    %c0_i32_0 = arith.constant 0 : i32
    %c0_i32_1 = arith.constant 0 : i32
    return %c0_i32, %c0_i32_0 : i32, i32
  }
  func.func @transform_6(%arg0: i32) -> (i32, i32) {
    %c0_i32 = arith.constant 0 : i32
    %c0_i32_0 = arith.constant 0 : i32
    %c0_i32_1 = arith.constant 0 : i32
    return %c0_i32, %c0_i32_0 : i32, i32
  }
  func.func @transform_7(%arg0: i32) -> (i32, i32) {
    %c0_i32 = arith.constant 0 : i32
    %c0_i32_0 = arith.constant 0 : i32
    return %arg0, %c0_i32 : i32, i32
  }
}

</mosaic_0001>

<llo_original>
// kernel: tpu_custom_call.1
$region0: #{tpu_custom_call.1}
  #allocation0 [shape = 'u32[]', space=smem, size = 0x4, offset = 0x4, fixed_abs, tag = 'smem constant byte address 0x4 - core index']
  #allocation1 [shape = 'u32[72,128]{1,0:T(1,128)}', space=vmem, size = 0x9000, scoped, tag = 'internal scratch']
  %s0 = inlined_call_operand.hbm [shape: bf16[24,128], index: 0, kind: input, shape index: {}]
  %s1 = inlined_call_operand.hbm [shape: bf16[128,128], index: 1, kind: input, shape index: {}]
  %s2 = inlined_call_operand.vmem [shape: f32[1,128], index: 2, kind: input, shape index: {}]
  %s3 = inlined_call_operand.hbm [shape: bf16[128,128], index: 3, kind: input, shape index: {}]
  %s4 = inlined_call_operand.vmem [shape: f32[1,128], index: 4, kind: input, shape index: {}]
  %s5 = inlined_call_operand.vmem [shape: f32[1,128], index: 5, kind: input, shape index: {}]
  %s6 = inlined_call_operand.vmem [shape: f32[1,128], index: 6, kind: input, shape index: {}]
  %s7 = inlined_call_operand.hbm [shape: f32[24,128], index: 7, kind: output, shape index: {}]
  %s8 = sld [smem:[#allocation0]]
  $region73: #{tpu_custom_call.1} parent=0
    _
  %s10 = ssub.s32 1, %s8
  %s11 = scalar_select 0, %s10, %s8
  $region1: #{tpu_custom_call.1} parent=0
    #allocation2 [shape = 'u8[4096]{0}', space=vmem, size = 0x1000, scoped, tag = 'input window, operand 0']
    #allocation3 [shape = 's32[2]{0}', space=sflag, size = 0x8, scoped, tag = 'scoped memory for tpu_custom_call.1']
    #allocation4 [shape = 's32[2]{0}', space=sflag, size = 0x8, scoped, tag = 'scoped memory for tpu_custom_call.1']
    #allocation5 [shape = 'u8[32768]{0}', space=vmem, size = 0x8000, scoped, tag = 'input window, operand 1, single buffered']
    #allocation6 [shape = 's32[1]{0}', space=sflag, size = 0x4, scoped, tag = 'scoped memory for tpu_custom_call.1']
    #allocation7 [shape = 'u8[32768]{0}', space=vmem, size = 0x8000, scoped, tag = 'input window, operand 3, single buffered']
    #allocation8 [shape = 'u8[8192]{0}', space=vmem, size = 0x2000, scoped, tag = 'output window, operand 0']
    %12 = vsyncpa [#allocation3], 0
    %s13 = scalar_lea.sflag [#allocation3], 1
    %14 = vsyncpa %s13, 0
    %15 = vsyncpa [#allocation6], 0
    %16 = vsyncpa [#allocation4], 0
    %s17 = scalar_lea.sflag [#allocation4], 1
    %18 = vsyncpa %s17, 0
    loop: start=0, step=1, limit=5
    $region2: #{tpu_custom_call.1} parent=1 // loop_pre_header
      _
    $region3: #{tpu_custom_call.1} parent=1 // loop_header
      %s20 = sphi 0, %s24
      %p21 = scmp.ge.s32.totalorder %s20, 5
      %s30 = sphi 0, %s32
      %s33 = sphi 0, %s30
      %s34 = sphi 0, %s33
      %s50 = sphi 0, %s34
      %s54 = sphi 0, %s54
      %s56 = sphi 0, %s54
      %s57 = sphi 0, %s56
      %s71 = sphi 0, %s57
      %s75 = sphi 0, %s75
      %s77 = sphi 0, %s75
      %s78 = sphi 0, %s77
      %s92 = sphi 0, %s78
      %s96 = sphi 0, %s96
      %s98 = sphi 0, %s96
      %s99 = sphi 0, %s98
      %s113 = sphi 0, %s99
      %s117 = sphi 0, %s117
      %s119 = sphi 0, %s117
      %s120 = sphi 0, %s119
      %s134 = sphi 0, %s120
      %s138 = sphi 0, %s138
      %s140 = sphi 0, %s138
      %s141 = sphi 0, %s140
      %s155 = sphi 0, %s141
      %s159 = sphi 0, %s159
      %s161 = sphi 0, %s159
      %s162 = sphi 0, %s161
      %s176 = sphi 0, %s162
      %s182 = sphi 0, %s184
      %s185 = sphi 0, %s182
      %s186 = sphi 0, %s185
      %s202 = sphi 0, %s186
    $region4: #{tpu_custom_call.1} parent=1 // loop_header_branch
      %23 = sbr.rel (%p21) target = $region8
    $region5: #{tpu_custom_call.1} parent=1 // loop_body
      %s25 = ssub.s32 %s20, 1
      %s26 = ssub.s32 %s20, 2
      %s27 = sadd.s32 %s20, 1
      %s28 = ssub.s32 %s20, %s27
      %p29 = scmp.eq.s32.totalorder %s28, 0
      %s31 = sadd.s32 %s30, 1
      %s32 = scalar_select %p29, %s30, %s31
      %p35 = pneg %p29
      %p36 = scmp.eq.s32.totalorder %s20, 2
      %p37 = por %p35, %p36
      %p38 = scmp.ne.s32.totalorder %s30, %s33
      %p39 = scmp.eq.s32.totalorder %s20, 0
      %p40 = por %p38, %p39
      %p41 = scmp.ne.s32.totalorder %s30, %s33
      %p42 = scmp.eq.s32.totalorder %s25, 2
      %p43 = por %p41, %p42
      %p44 = scmp.ne.s32.totalorder %s33, %s34
      %p45 = scmp.eq.s32.totalorder %s25, 0
      %p46 = por %p44, %p45
      %p47 = scmp.ne.s32.totalorder %s33, %s34
      %p48 = scmp.eq.s32.totalorder %s26, 2
      %p49 = por %p47, %p48
      %p51 = scmp.ne.s32.totalorder %s34, %s50
      %p52 = scmp.eq.s32.totalorder %s26, 0
      %p53 = por %p51, %p52
      %s55 = sadd.s32 %s54, 1
      %p58 = scmp.eq.s32.totalorder %s20, 2
      %p59 = scmp.ne.s32.totalorder %s54, %s56
      %p60 = scmp.eq.s32.totalorder %s20, 0
      %p61 = por %p59, %p60
      %p62 = scmp.ne.s32.totalorder %s54, %s56
      %p63 = scmp.eq.s32.totalorder %s25, 2
      %p64 = por %p62, %p63
      %p65 = scmp.ne.s32.totalorder %s56, %s57
      %p66 = scmp.eq.s32.totalorder %s25, 0
      %p67 = por %p65, %p66
      %p68 = scmp.ne.s32.totalorder %s56, %s57
      %p69 = scmp.eq.s32.totalorder %s26, 2
      %p70 = por %p68, %p69
      %p72 = scmp.ne.s32.totalorder %s57, %s71
      %p73 = scmp.eq.s32.totalorder %s26, 0
      %p74 = por %p72, %p73
      %s76 = sadd.s32 %s75, 1
      %p79 = scmp.eq.s32.totalorder %s20, 2
      %p80 = scmp.ne.s32.totalorder %s75, %s77
      %p81 = scmp.eq.s32.totalorder %s20, 0
      %p82 = por %p80, %p81
      %p83 = scmp.ne.s32.totalorder %s75, %s77
      %p84 = scmp.eq.s32.totalorder %s25, 2
      %p85 = por %p83, %p84
      %p86 = scmp.ne.s32.totalorder %s77, %s78
      %p87 = scmp.eq.s32.totalorder %s25, 0
      %p88 = por %p86, %p87
      %p89 = scmp.ne.s32.totalorder %s77, %s78
      %p90 = scmp.eq.s32.totalorder %s26, 2
      %p91 = por %p89, %p90
      %p93 = scmp.ne.s32.totalorder %s78, %s92
      %p94 = scmp.eq.s32.totalorder %s26, 0
      %p95 = por %p93, %p94
      %s97 = sadd.s32 %s96, 1
      %p100 = scmp.eq.s32.totalorder %s20, 2
      %p101 = scmp.ne.s32.totalorder %s96, %s98
      %p102 = scmp.eq.s32.totalorder %s20, 0
      %p103 = por %p101, %p102
      %p104 = scmp.ne.s32.totalorder %s96, %s98
      %p105 = scmp.eq.s32.totalorder %s25, 2
      %p106 = por %p104, %p105
      %p107 = scmp.ne.s32.totalorder %s98, %s99
      %p108 = scmp.eq.s32.totalorder %s25, 0
      %p109 = por %p107, %p108
      %p110 = scmp.ne.s32.totalorder %s98, %s99
      %p111 = scmp.eq.s32.totalorder %s26, 2
      %p112 = por %p110, %p111
      %p114 = scmp.ne.s32.totalorder %s99, %s113
      %p115 = scmp.eq.s32.totalorder %s26, 0
      %p116 = por %p114, %p115
      %s118 = sadd.s32 %s117, 1
      %p121 = scmp.eq.s32.totalorder %s20, 2
      %p122 = scmp.ne.s32.totalorder %s117, %s119
      %p123 = scmp.eq.s32.totalorder %s20, 0
      %p124 = por %p122, %p123
      %p125 = scmp.ne.s32.totalorder %s117, %s119
      %p126 = scmp.eq.s32.totalorder %s25, 2
      %p127 = por %p125, %p126
      %p128 = scmp.ne.s32.totalorder %s119, %s120
      %p129 = scmp.eq.s32.totalorder %s25, 0
      %p130 = por %p128, %p129
      %p131 = scmp.ne.s32.totalorder %s119, %s120
      %p132 = scmp.eq.s32.totalorder %s26, 2
      %p133 = por %p131, %p132
      %p135 = scmp.ne.s32.totalorder %s120, %s134
      %p136 = scmp.eq.s32.totalorder %s26, 0
      %p137 = por %p135, %p136
      %s139 = sadd.s32 %s138, 1
      %p142 = scmp.eq.s32.totalorder %s20, 2
      %p143 = scmp.ne.s32.totalorder %s138, %s140
      %p144 = scmp.eq.s32.totalorder %s20, 0
      %p145 = por %p143, %p144
      %p146 = scmp.ne.s32.totalorder %s138, %s140
      %p147 = scmp.eq.s32.totalorder %s25, 2
      %p148 = por %p146, %p147
      %p149 = scmp.ne.s32.totalorder %s140, %s141
      %p150 = scmp.eq.s32.totalorder %s25, 0
      %p151 = por %p149, %p150
      %p152 = scmp.ne.s32.totalorder %s140, %s141
      %p153 = scmp.eq.s32.totalorder %s26, 2
      %p154 = por %p152, %p153
      %p156 = scmp.ne.s32.totalorder %s141, %s155
      %p157 = scmp.eq.s32.totalorder %s26, 0
      %p158 = por %p156, %p157
      %s160 = sadd.s32 %s159, 1
      %p163 = scmp.eq.s32.totalorder %s20, 2
      %p164 = scmp.ne.s32.totalorder %s159, %s161
      %p165 = scmp.eq.s32.totalorder %s20, 0
      %p166 = por %p164, %p165
      %p167 = scmp.ne.s32.totalorder %s159, %s161
      %p168 = scmp.eq.s32.totalorder %s25, 2
      %p169 = por %p167, %p168
      %p170 = scmp.ne.s32.totalorder %s161, %s162
      %p171 = scmp.eq.s32.totalorder %s25, 0
      %p172 = por %p170, %p171
      %p173 = scmp.ne.s32.totalorder %s161, %s162
      %p174 = scmp.eq.s32.totalorder %s26, 2
      %p175 = por %p173, %p174
      %p177 = scmp.ne.s32.totalorder %s162, %s176
      %p178 = scmp.eq.s32.totalorder %s26, 0
      %p179 = por %p177, %p178
      %s180 = ssub.s32 %s20, %s27
      %p181 = scmp.eq.s32.totalorder %s180, 0
      %s183 = sadd.s32 %s182, 1
      %s184 = scalar_select %p181, %s182, %s183
      %p187 = pneg %p181
      %p188 = scmp.eq.s32.totalorder %s20, 2
      %p189 = por %p187, %p188
      %p190 = scmp.ne.s32.totalorder %s182, %s185
      %p191 = scmp.eq.s32.totalorder %s20, 0
      %p192 = por %p190, %p191
      %p193 = scmp.ne.s32.totalorder %s182, %s185
      %p194 = scmp.eq.s32.totalorder %s25, 2
      %p195 = por %p193, %p194
      %p196 = scmp.ne.s32.totalorder %s185, %s186
      %p197 = scmp.eq.s32.totalorder %s25, 0
      %p198 = por %p196, %p197
      %p199 = scmp.ne.s32.totalorder %s185, %s186
      %p200 = scmp.eq.s32.totalorder %s26, 2
      %p201 = por %p199, %p200
      %p203 = scmp.ne.s32.totalorder %s186, %s202
      %p204 = scmp.eq.s32.totalorder %s26, 0
      %p205 = por %p203, %p204
      %p206 = scmp.le.s32.totalorder 1, %s20
      %p207 = scmp.lt.s32.totalorder %s20, 4
      %p208 = pnand %p206, %p207
      %p209 = pneg %p208
      // Predicated region
      $region9: #{tpu_custom_call.1} parent=5 // pred_check
        _
      $region10: #{tpu_custom_call.1} parent=5 // pred_check_branch
        %211 = sbr.rel (%p208) target = $region12
      $region11: #{tpu_custom_call.1} parent=5 // pred_region
        %s212 = ssub.s32 %s20, 1
        // Predicated region
        $region13: #{tpu_custom_call.1} parent=11 // pred_check
          %p213 = pneg %p67
        $region14: #{tpu_custom_call.1} parent=11 // pred_check_branch
          %215 = sbr.rel (%p213) target = $region16
        $region15: #{tpu_custom_call.1} parent=11 // pred_region
          %217 = vsyncadd [#allocation6], 0
          %s218 = sshll.u32 %s1, 4
          %s219 = int_to_ptr.hbm [resolvable:$true] %s218
          %s220 = sshll.u32 [#allocation5], 4
          %s221 = int_to_ptr.vmem [resolvable:$true] %s220
          %226 = dma.hbm_to_vmem [thread:$0]  %s219, 1024, %s221, [#allocation6], 64, 64, 4
        $region16: #{tpu_custom_call.1} parent=11 // pred_fallthru
          _
        // Predicated region
        $region17: #{tpu_custom_call.1} parent=11 // pred_check
          %p227 = pneg %p88
        $region18: #{tpu_custom_call.1} parent=11 // pred_check_branch
          %229 = sbr.rel (%p227) target = $region20
        $region19: #{tpu_custom_call.1} parent=11 // pred_region
          _
        $region20: #{tpu_custom_call.1} parent=11 // pred_fallthru
          _
        // Predicated region
        $region21: #{tpu_custom_call.1} parent=11 // pred_check
          %p230 = pneg %p109
        $region22: #{tpu_custom_call.1} parent=11 // pred_check_branch
          %232 = sbr.rel (%p230) target = $region24
        $region23: #{tpu_custom_call.1} parent=11 // pred_region
          %234 = vsyncadd [#allocation6], 0
          %s235 = sshll.u32 %s3, 4
          %s236 = int_to_ptr.hbm [resolvable:$true] %s235
          %s237 = sshll.u32 [#allocation7], 4
          %s238 = int_to_ptr.vmem [resolvable:$true] %s237
          %243 = dma.hbm_to_vmem [thread:$0]  %s236, 1024, %s238, [#allocation6], 64, 64, 4
        $region24: #{tpu_custom_call.1} parent=11 // pred_fallthru
          _
        // Predicated region
        $region25: #{tpu_custom_call.1} parent=11 // pred_check
          %p244 = pneg %p130
        $region26: #{tpu_custom_call.1} parent=11 // pred_check_branch
          %246 = sbr.rel (%p244) target = $region28
        $region27: #{tpu_custom_call.1} parent=11 // pred_region
          _
        $region28: #{tpu_custom_call.1} parent=11 // pred_fallthru
          _
        // Predicated region
        $region29: #{tpu_custom_call.1} parent=11 // pred_check
          %p247 = pneg %p151
        $region30: #{tpu_custom_call.1} parent=11 // pred_check_branch
          %249 = sbr.rel (%p247) target = $region32
        $region31: #{tpu_custom_call.1} parent=11 // pred_region
          _
        $region32: #{tpu_custom_call.1} parent=11 // pred_fallthru
          _
        // Predicated region
        $region33: #{tpu_custom_call.1} parent=11 // pred_check
          %p250 = pneg %p172
        $region34: #{tpu_custom_call.1} parent=11 // pred_check_branch
          %252 = sbr.rel (%p250) target = $region36
        $region35: #{tpu_custom_call.1} parent=11 // pred_region
          _
        $region36: #{tpu_custom_call.1} parent=11 // pred_fallthru
          _
      $region12: #{tpu_custom_call.1} parent=5 // pred_fallthru
        _
      %p253 = scmp.lt.s32.totalorder %s20, 3
      // Predicated region
      $region37: #{tpu_custom_call.1} parent=5 // pred_check
        %p254 = pneg %p253
      $region38: #{tpu_custom_call.1} parent=5 // pred_check_branch
        %256 = sbr.rel (%p254) target = $region40
      $region39: #{tpu_custom_call.1} parent=5 // pred_region
        // Predicated region
        $region41: #{tpu_custom_call.1} parent=39 // pred_check
          %p257 = pneg %p40
        $region42: #{tpu_custom_call.1} parent=39 // pred_check_branch
          %259 = sbr.rel (%p257) target = $region44
        $region43: #{tpu_custom_call.1} parent=39 // pred_region
          %s260 = sand.u32 %s30, 1
          %s261 = scalar_lea.sflag [#allocation3], %s260
          %s262 = sand.u32 %s30, 1
          %s263 = smul.addr %s262, 4
          %s264 = scalar_lea.vmem [#allocation2], %s263
          %266 = vsyncadd %s261, 0
          %s267 = smul.addr %s20, 4
          %s268 = scalar_lea.hbm %s0, %s267
          %s270 = sshll.u32 %s268, 4
          %s271 = int_to_ptr.hbm [resolvable:$true] %s270
          %s272 = sshll.u32 %s264, 4
          %s273 = int_to_ptr.vmem [resolvable:$true] %s272
          %275 = dma.hbm_to_vmem [thread:$0]  %s271, 64, %s273, %s261
        $region44: #{tpu_custom_call.1} parent=39 // pred_fallthru
          _
      $region40: #{tpu_custom_call.1} parent=5 // pred_fallthru
        _
      %p276 = scmp.le.s32.totalorder 1, %s20
      %p277 = scmp.lt.s32.totalorder %s20, 4
      %p278 = pnand %p276, %p277
      %p279 = pneg %p278
      // Predicated region
      $region45: #{tpu_custom_call.1} parent=5 // pred_check
        _
      $region46: #{tpu_custom_call.1} parent=5 // pred_check_branch
        %281 = sbr.rel (%p278) target = $region48
      $region47: #{tpu_custom_call.1} parent=5 // pred_region
        %s282 = ssub.s32 %s20, 1
        %s283 = sand.u32 %s33, 1
        %s284 = scalar_lea.sflag [#allocation3], %s283
        %s285 = sand.u32 %s33, 1
        %s286 = smul.addr %s285, 4
        %s287 = scalar_lea.vmem [#allocation2], %s286
        // Predicated region
        $region49: #{tpu_custom_call.1} parent=47 // pred_check
          %p288 = pneg %p46
        $region50: #{tpu_custom_call.1} parent=47 // pred_check_branch
          %290 = sbr.rel (%p288) target = $region52
        $region51: #{tpu_custom_call.1} parent=47 // pred_region
          %292 = dma.done %s284, 64
        $region52: #{tpu_custom_call.1} parent=47 // pred_fallthru
          _
        // Predicated region
        $region53: #{tpu_custom_call.1} parent=47 // pred_check
          %p293 = pneg %p67
        $region54: #{tpu_custom_call.1} parent=47 // pred_check_branch
          %295 = sbr.rel (%p293) target = $region56
        $region55: #{tpu_custom_call.1} parent=47 // pred_region
          %297 = dma.done [#allocation6], 1024
        $region56: #{tpu_custom_call.1} parent=47 // pred_fallthru
          _
        // Predicated region
        $region57: #{tpu_custom_call.1} parent=47 // pred_check
          %p298 = pneg %p109
        $region58: #{tpu_custom_call.1} parent=47 // pred_check_branch
          %300 = sbr.rel (%p298) target = $region60
        $region59: #{tpu_custom_call.1} parent=47 // pred_region
          %302 = dma.done [#allocation6], 1024
        $region60: #{tpu_custom_call.1} parent=47 // pred_fallthru
          _
        %s303 = sand.u32 %s33, 1
        %s304 = scalar_lea.sflag [#allocation3], %s303
        %s305 = sand.u32 %s33, 1
        %s306 = smul.addr %s305, 4
        %s307 = scalar_lea.vmem [#allocation2], %s306
        %p308 = pneg %p46
        %p309 = pneg %p43
        %p310 = pneg %p67
        %p311 = pneg %p64
        %p312 = pneg %p88
        %p313 = pneg %p85
        %p314 = pneg %p109
        %p315 = pneg %p106
        %p316 = pneg %p130
        %p317 = pneg %p127
        %p318 = pneg %p151
        %p319 = pneg %p148
        %p320 = pneg %p172
        %p321 = pneg %p169
        %p322 = pneg %p198
        %p323 = pneg %p195
        %s324 = sand.u32 %s185, 1
        %s325 = scalar_lea.sflag [#allocation4], %s324
        %s326 = sand.u32 %s185, 1
        %s327 = smul.addr %s326, 8
        %s328 = scalar_lea.vmem [#allocation8], %s327
        %v329 = vld [vmem:[%s287] sm:$0xf]
        %v330 = vld [vmem:[#allocation5] sm:$0xf]
        %v331 = vld [vmem:[#allocation5 + $0x4] sm:$0xf]
        %v332 = vld [vmem:[#allocation5 + $0x8] sm:$0xf]
        %v333 = vld [vmem:[#allocation5 + $0xc] sm:$0xf]
        %v334 = vld [vmem:[#allocation5 + $0x10] sm:$0xf]
        %v335 = vld [vmem:[#allocation5 + $0x14] sm:$0xf]
        %v336 = vld [vmem:[#allocation5 + $0x18] sm:$0xf]
        %v337 = vld [vmem:[#allocation5 + $0x1c] sm:$0xf]
        %v338 = vld [vmem:[#allocation5 + $0x20] sm:$0xf]
        %v339 = vld [vmem:[#allocation5 + $0x24] sm:$0xf]
        %v340 = vld [vmem:[#allocation5 + $0x28] sm:$0xf]
        %v341 = vld [vmem:[#allocation5 + $0x2c] sm:$0xf]
        %v342 = vld [vmem:[#allocation5 + $0x30] sm:$0xf]
        %v343 = vld [vmem:[#allocation5 + $0x34] sm:$0xf]
        %v344 = vld [vmem:[#allocation5 + $0x38] sm:$0xf]
        %v345 = vld [vmem:[#allocation5 + $0x3c] sm:$0xf]
        %v346 = vld [vmem:[#allocation7] sm:$0xf]
        %v347 = vld [vmem:[#allocation7 + $0x4] sm:$0xf]
        %v348 = vld [vmem:[#allocation7 + $0x8] sm:$0xf]
        %v349 = vld [vmem:[#allocation7 + $0xc] sm:$0xf]
        %v350 = vld [vmem:[#allocation7 + $0x10] sm:$0xf]
        %v351 = vld [vmem:[#allocation7 + $0x14] sm:$0xf]
        %v352 = vld [vmem:[#allocation7 + $0x18] sm:$0xf]
        %v353 = vld [vmem:[#allocation7 + $0x1c] sm:$0xf]
        %v354 = vld [vmem:[#allocation7 + $0x20] sm:$0xf]
        %v355 = vld [vmem:[#allocation7 + $0x24] sm:$0xf]
        %v356 = vld [vmem:[#allocation7 + $0x28] sm:$0xf]
        %v357 = vld [vmem:[#allocation7 + $0x2c] sm:$0xf]
        %v358 = vld [vmem:[#allocation7 + $0x30] sm:$0xf]
        %v359 = vld [vmem:[#allocation7 + $0x34] sm:$0xf]
        %v360 = vld [vmem:[#allocation7 + $0x38] sm:$0xf]
        %v361 = vld [vmem:[#allocation7 + $0x3c] sm:$0xf]
        %v362 = vld [vmem:[%s2] sm:$0x1]
        %v363 = vld [vmem:[%s4] sm:$0x1]
        %v364 = vld [vmem:[%s5] sm:$0x1]
        %v365 = vld [vmem:[%s6] sm:$0x1]
        %v367 = vperm.slane %v362, 0
        %v385 = vunpack.c.l.b16 %v330
        %v386 = vunpack.c.l.b16 %v331
        %v387 = vunpack.c.l.b16 %v332
        %v388 = vunpack.c.l.b16 %v333
        %v389 = vunpack.c.l.b16 %v334
        %v390 = vunpack.c.l.b16 %v335
        %v391 = vunpack.c.l.b16 %v336
        %v392 = vunpack.c.l.b16 %v337
        %v393 = vunpack.c.l.b16 %v338
        %v394 = vunpack.c.l.b16 %v339
        %v395 = vunpack.c.l.b16 %v340
        %v396 = vunpack.c.l.b16 %v341
        %v397 = vunpack.c.l.b16 %v342
        %v398 = vunpack.c.l.b16 %v343
        %v399 = vunpack.c.l.b16 %v344
        %v400 = vunpack.c.l.b16 %v345
        %v401 = vpack.c.b16 %v386, %v385
        %v402 = vpack.c.b16 %v388, %v387
        %v403 = vpack.c.b16 %v390, %v389
        %v404 = vpack.c.b16 %v392, %v391
        %v405 = vpack.c.b16 %v394, %v393
        %v406 = vpack.c.b16 %v396, %v395
        %v407 = vpack.c.b16 %v398, %v397
        %v408 = vpack.c.b16 %v400, %v399
        %417 = vmatpush.bf16.msra.mxu0 %v408
        %418 = vmatpush.bf16.msra.mxu0 %v407
        %419 = vmatpush.bf16.msra.mxu0 %v406
        %420 = vmatpush.bf16.msra.mxu0 %v405
        %421 = vmatpush.bf16.msra.mxu0 %v404
        %422 = vmatpush.bf16.msra.mxu0 %v403
        %423 = vmatpush.bf16.msra.mxu0 %v402
        %424 = vmatpush.bf16.msra.mxu0 %v401
        %425 = vmatmul.bf16.gmra.mxu0 %v329
        %v426 = vpop.f32.mrf.mxu0
        %v427 = vadd.f32 %v367, %v426
        %v428 = vpop.f32.mrf.mxu0
        %429 = vdwg.mxu0
        %v430 = vmul.f32 %v427, 0.5
        %v431 = vmul.f32 %v427, 0.70710677
        %v432 = vmul.f32 %v431, %v431
        %v433 = vmin.f32 16.0, %v432
        %v434 = vmul.f32 %v433, 2.1237322e-06
        %v435 = vadd.f32 %v434, 0.00028619796
        %v436 = vmul.f32 %v433, %v435
        %v437 = vadd.f32 %v436, 0.0036580483
        %v438 = vmul.f32 %v433, %v437
        %v439 = vadd.f32 %v438, 0.05243302
        %v440 = vmul.f32 %v433, %v439
        %v441 = vadd.f32 %v440, 0.18741608
        %v442 = vmul.f32 %v433, %v441
        %v443 = vadd.f32 %v442, 1.1283791
        %v444 = vmul.f32 %v431, %v443
        %v445 = vmul.f32 %v433, 3.8918573e-05
        %v446 = vadd.f32 %v445, 0.001143296
        %v447 = vmul.f32 %v433, %v446
        %v448 = vadd.f32 %v447, 0.014752088
        %v449 = vmul.f32 %v433, %v448
        %v450 = vadd.f32 %v449, 0.112945676
        %v451 = vmul.f32 %v433, %v450
        %v452 = vadd.f32 %v451, 0.4994258
        %v453 = vmul.f32 %v433, %v452
        %v454 = vadd.f32 %v453, 1.0
        %v455 = vrcp.pop %v454
        %v456 = vmul.f32 %v454, %v455
        %v457 = vsub.f32 1.0, %v456
        %v458 = vmul.f32 %v455, %v457
        %v459 = vadd.f32 %v455, %v458
        %vm460 = vweird.f32 %v454
        %vm461 = vweird.f32 %v455
        %vm462 = vmor %vm460, %vm461
        %v463 = vsel %vm462, %v455, %v459
        %v464 = vand.u32 2147483647, %v454
        %vm465 = vcmp.eq.f32.partialorder %v464, 8.507059e+37
        %v466 = vand.u32 %v454, 2147483648
        %v467 = vor.u32 1.1754944e-38, %v466
        %v468 = vsel %vm465, %v467, %v463
        %v469 = vmul.f32 %v444, %v468
        %v470 = vmin.f32 %v469, 1.0
        %v471 = vmax.f32 %v470, -1.0
        %v472 = vadd.f32 %v471, 1.0
        %v473 = vmul.f32 %v430, %v472
        %v474 = vpack.c.bf16 %v473, %v473
        %v476 = vperm.slane %v363, 0
        %v494 = vunpack.c.l.b16 %v346
        %v495 = vunpack.c.l.b16 %v347
        %v496 = vunpack.c.l.b16 %v348
        %v497 = vunpack.c.l.b16 %v349
        %v498 = vunpack.c.l.b16 %v350
        %v499 = vunpack.c.l.b16 %v351
        %v500 = vunpack.c.l.b16 %v352
        %v501 = vunpack.c.l.b16 %v353
        %v502 = vunpack.c.l.b16 %v354
        %v503 = vunpack.c.l.b16 %v355
        %v504 = vunpack.c.l.b16 %v356
        %v505 = vunpack.c.l.b16 %v357
        %v506 = vunpack.c.l.b16 %v358
        %v507 = vunpack.c.l.b16 %v359
        %v508 = vunpack.c.l.b16 %v360
        %v509 = vunpack.c.l.b16 %v361
        %v510 = vpack.c.b16 %v495, %v494
        %v511 = vpack.c.b16 %v497, %v496
        %v512 = vpack.c.b16 %v499, %v498
        %v513 = vpack.c.b16 %v501, %v500
        %v514 = vpack.c.b16 %v503, %v502
        %v515 = vpack.c.b16 %v505, %v504
        %v516 = vpack.c.b16 %v507, %v506
        %v517 = vpack.c.b16 %v509, %v508
        %526 = vmatpush.bf16.msra.mxu0 %v517
        %527 = vmatpush.bf16.msra.mxu0 %v516
        %528 = vmatpush.bf16.msra.mxu0 %v515
        %529 = vmatpush.bf16.msra.mxu0 %v514
        %530 = vmatpush.bf16.msra.mxu0 %v513
        %531 = vmatpush.bf16.msra.mxu0 %v512
        %532 = vmatpush.bf16.msra.mxu0 %v511
        %533 = vmatpush.bf16.msra.mxu0 %v510
        %534 = vmatmul.bf16.gmra.mxu0 %v474
        %v535 = vpop.f32.mrf.mxu0
        %v536 = vadd.f32 %v476, %v535
        %v537 = vpop.f32.mrf.mxu0
        %538 = vdwg.mxu0
        %v539 = vadd.f32 %v536, %v427
        %540 = vadd.xlane.f32.xlu0 %v539
        %v541 = vpop.xlane.xlu0 %540
        %v542 = vmul.f32 %v541, 0.03125
        %v543 = vmul.f32 %v539, %v539
        %544 = vadd.xlane.f32.xlu0 %v543
        %v545 = vpop.xlane.xlu0 %544
        %v546 = vmul.f32 %v545, 0.03125
        %v547 = vmul.f32 %v542, %v542
        %v548 = vsub.f32 %v546, %v547
        %v549 = vsub.f32 %v539, %v542
        %v550 = vadd.f32 %v548, 1e-05
        %v551 = vrsqrt.pop %v550
        %v552 = vmul.f32 %v551, %v550
        %v553 = vmul.f32 %v552, %v551
        %v554 = vmul.f32 0.5, %v553
        %v555 = vsub.f32 1.5, %v554
        %v556 = vmul.f32 %v551, %v555
        %vm557 = vweird.f32 %v550
        %vm558 = vweird.f32 %v551
        %vm559 = vmor %vm557, %vm558
        %v560 = vsel %vm559, %v551, %v556
        %v561 = vmul.f32 %v549, %v560
        %v563 = vperm.slane %v364, 0
        %v565 = vmul.f32 %v561, %v563
        %v567 = vperm.slane %v365, 0
        %v569 = vadd.f32 %v565, %v567
        %570 = vst [vmem:[%s328] sm:$0xff] %v569
        %s571 = sand.u32 %s185, 1
        %s572 = scalar_lea.sflag [#allocation4], %s571
        %s573 = sand.u32 %s185, 1
        %s574 = smul.addr %s573, 8
        %s575 = scalar_lea.vmem [#allocation8], %s574
        // Predicated region
        $region61: #{tpu_custom_call.1} parent=47 // pred_check
          %p576 = pneg %p195
        $region62: #{tpu_custom_call.1} parent=47 // pred_check_branch
          %578 = sbr.rel (%p576) target = $region64
        $region63: #{tpu_custom_call.1} parent=47 // pred_region
          %580 = vsyncadd %s572, 0
          %s581 = smul.addr %s25, 8
          %s582 = scalar_lea.hbm %s7, %s581
          %s584 = sshll.u32 %s575, 4
          %s585 = int_to_ptr.vmem [resolvable:$true] %s584
          %s586 = sshll.u32 %s582, 4
          %s587 = int_to_ptr.hbm [resolvable:$true] %s586
          %589 = dma.vmem_to_hbm [thread:$0]  %s585, 128, %s587, %s572
        $region64: #{tpu_custom_call.1} parent=47 // pred_fallthru
          _
      $region48: #{tpu_custom_call.1} parent=5 // pred_fallthru
        _
      %p590 = scmp.le.s32.totalorder 2, %s20
      // Predicated region
      $region65: #{tpu_custom_call.1} parent=5 // pred_check
        %p591 = pneg %p590
      $region66: #{tpu_custom_call.1} parent=5 // pred_check_branch
        %593 = sbr.rel (%p591) target = $region68
      $region67: #{tpu_custom_call.1} parent=5 // pred_region
        %s594 = ssub.s32 %s20, 2
        // Predicated region
        $region69: #{tpu_custom_call.1} parent=67 // pred_check
          %p595 = pneg %p201
        $region70: #{tpu_custom_call.1} parent=67 // pred_check_branch
          %597 = sbr.rel (%p595) target = $region72
        $region71: #{tpu_custom_call.1} parent=67 // pred_region
          %s598 = sand.u32 %s186, 1
          %s599 = scalar_lea.sflag [#allocation4], %s598
          %s600 = sand.u32 %s186, 1
          %s601 = smul.addr %s600, 8
          %s602 = scalar_lea.vmem [#allocation8], %s601
          %604 = dma.done %s599, 128
        $region72: #{tpu_custom_call.1} parent=67 // pred_fallthru
          _
      $region68: #{tpu_custom_call.1} parent=5 // pred_fallthru
        _
    $region6: #{tpu_custom_call.1} parent=1 // loop_footer
      %s24 = sadd.s32 1, %s20
    $region7: #{tpu_custom_call.1} parent=1 // loop_footer_branch
      %19 = sbr.rel target = $region3
    $region8: #{tpu_custom_call.1} parent=1 // loop_exit
      _
    %605 = vsyncpa [#allocation3], 1
    %s606 = scalar_lea.sflag [#allocation3], 1
    %607 = vsyncpa %s606, 1
    %608 = vsyncpa [#allocation6], 1
    %609 = vsyncpa [#allocation4], 1
    %s610 = scalar_lea.sflag [#allocation4], 1
    %611 = vsyncpa %s610, 1

</llo_original>
